<compile_context>
chip_gen: v5e
topology: v5e:2x2
jax: 0.10.0
libtpu: 0.0.40
codegen_flags: <defaults>
</compile_context>

<pallas_src>
import functools

import jax
import jax.numpy as jnp
from jax.experimental import pallas as pl
from jax.experimental.pallas import tpu as pltpu


def _round_up(x, m):
    return ((x + m - 1) // m) * m


def _bert_output_kernel(x_ref, w_ref, b_ref, res_ref, gamma_ref, beta_ref,
                        o_ref, *, eps):
    # Dense: x @ W + b.  x/W tiles are bf16; MXU accumulates in f32.
    h = jnp.dot(x_ref[...], w_ref[...], preferred_element_type=jnp.float32)
    h = h + b_ref[...]                          # bias broadcast over rows (f32)
    # Dropout: inference mode -> identity (hidden_dropout_prob has no effect).
    h = h + res_ref[...].astype(jnp.float32)    # residual add
    # LayerNorm over the hidden (lane) dim — single-pass statistics.
    mean = jnp.mean(h, axis=-1, keepdims=True)
    meansq = jnp.mean(h * h, axis=-1, keepdims=True)
    var = jnp.maximum(meansq - mean * mean, 0.0)
    inv = jax.lax.rsqrt(var + eps)              # EUP rsqrt (free slot)
    o_ref[...] = ((h - mean) * inv * gamma_ref[...]
                  + beta_ref[...]).astype(o_ref.dtype)


def bert_output(hidden_states, input_tensor, w, b, gamma, beta,
                *, eps=1e-12, row_tile=None, matmul_dtype=jnp.bfloat16):
    """Fused BertOutput forward (eval mode: dropout is identity).

    hidden_states: [B, S, I], input_tensor: [B, S, H]
    w: [I, H]  (already transposed from PyTorch's [H, I]), b/gamma/beta: [H].
    """
    B, S, I = hidden_states.shape
    H = input_tensor.shape[-1]
    N = B * S

    # ---- row tile selection -------------------------------------------------
    # 256 rows is MXU-friendly (matches the 256-wide MXU tile on v6e/v7x and is
    # a multiple of 128 for v5e) and keeps the per-step working set modest even
    # for BERT-large shapes under v7x's 64 MiB VMEM.
    if row_tile is not None:
        tm = row_tile
    else:
        tm = min(256, _round_up(N, 16))        # 16: bf16 sublane packing
    tm = max(16, _round_up(tm, 16))

    # Pad tokens so N is a tile multiple; padded rows are zeros and get sliced
    # off after the kernel (LayerNorm is row-wise, so padded rows are inert).
    N_pad = _round_up(N, tm)

    x2d = hidden_states.reshape(N, I).astype(matmul_dtype)
    res2d = input_tensor.reshape(N, H)
    if N_pad != N:
        x2d = jnp.pad(x2d, ((0, N_pad - N), (0, 0)))
        res2d = jnp.pad(res2d, ((0, N_pad - N), (0, 0)))

    w_mm = w.astype(matmul_dtype)              # resident weight, bf16 in VMEM
    b2d = b.reshape(1, H).astype(jnp.float32)
    gamma2d = gamma.reshape(1, H).astype(jnp.float32)
    beta2d = beta.reshape(1, H).astype(jnp.float32)

    out_dtype = hidden_states.dtype
    itemsize = lambda dt: jnp.dtype(dt).itemsize

    # ---- VMEM budget: double-buffered streaming tiles + resident weight ------
    # The constant-index weight block may still get two buffers from the
    # auto-pipeliner; count it twice to stay conservative.
    per_step_bytes = (
        2 * tm * I * itemsize(matmul_dtype)            # x tile (double-buffered)
        + 2 * tm * H * itemsize(res2d.dtype)           # residual tile
        + 2 * tm * H * itemsize(out_dtype)             # output tile
        + 2 * I * H * itemsize(matmul_dtype)           # weight (counted x2)
        + 3 * 2 * H * 4                                # bias / gamma / beta
    )
    # Clamp to 64 MiB so the request is valid on v7x as well as v5e/v6e.
    vmem_limit = int(min(max(per_step_bytes + (8 << 20), 32 << 20), 64 << 20))

    kernel = functools.partial(_bert_output_kernel, eps=eps)

    out2d = pl.pallas_call(
        kernel,
        out_shape=jax.ShapeDtypeStruct((N_pad, H), out_dtype),
        grid_spec=pltpu.PrefetchScalarGridSpec(
            num_scalar_prefetch=0,
            grid=(N_pad // tm,),
            in_specs=[
                pl.BlockSpec((tm, I), lambda i: (i, 0)),   # hidden_states tile
                pl.BlockSpec((I, H), lambda i: (0, 0)),    # weight (resident)
                pl.BlockSpec((1, H), lambda i: (0, 0)),    # bias
                pl.BlockSpec((tm, H), lambda i: (i, 0)),   # residual tile
                pl.BlockSpec((1, H), lambda i: (0, 0)),    # LN gamma
                pl.BlockSpec((1, H), lambda i: (0, 0)),    # LN beta
            ],
            out_specs=pl.BlockSpec((tm, H), lambda i: (i, 0)),
        ),
        compiler_params=pltpu.CompilerParams(
            dimension_semantics=("parallel",),   # shard row tiles across TCs
            vmem_limit_bytes=vmem_limit),
    )(x2d, w_mm, b2d, res2d, gamma2d, beta2d)

    if N_pad != N:
        out2d = out2d[:N]
    return out2d.reshape(B, S, H)


if __name__ == "__main__":
    # Small BERT-like config
    batch, seq = 2, 8
    intermediate_size = 256
    hidden_size = 128
    layer_norm_eps = 1e-12

    key = jax.random.PRNGKey(0)
    k1, k2, k3, k4 = jax.random.split(key, 4)

    # Synthetic parameters (shapes match nn.Linear / nn.LayerNorm).
    # PyTorch Linear weight is [hidden, intermediate]; we store it transposed.
    w = (jax.random.normal(k1, (intermediate_size, hidden_size), jnp.float32)
         * (1.0 / jnp.sqrt(intermediate_size)))
    b = jax.random.normal(k2, (hidden_size,), jnp.float32) * 0.02
    gamma = jnp.ones((hidden_size,), jnp.float32)
    beta = jnp.zeros((hidden_size,), jnp.float32)

    hidden_states = jax.random.normal(
        k3, (batch, seq, intermediate_size), jnp.float32)
    input_tensor = jax.random.normal(
        k4, (batch, seq, hidden_size), jnp.float32)

    out = bert_output(hidden_states, input_tensor, w, b, gamma, beta,
                      eps=layer_norm_eps)
    out = jax.block_until_ready(out)

    # Reference: replicate the bf16 operand rounding of the MXU path (f32
    # accumulation), then f32 bias / residual / LayerNorm.
    x_ref = (hidden_states.reshape(-1, intermediate_size)
             .astype(jnp.bfloat16).astype(jnp.float32))
    w_ref = w.astype(jnp.bfloat16).astype(jnp.float32)
    ref = x_ref @ w_ref + b
    ref = ref + input_tensor.reshape(-1, hidden_size)
    mu = ref.mean(-1, keepdims=True)
    var = ((ref - mu) ** 2).mean(-1, keepdims=True)
    ref = (ref - mu) / jnp.sqrt(var + layer_norm_eps) * gamma + beta
    ref = ref.reshape(batch, seq, hidden_size)
    assert jnp.allclose(out, ref, atol=2e-2, rtol=2e-2), "mismatch vs reference"

    print("KERNEL_OK")
</pallas_src>

<mosaic_0001>
module attributes {stable_mosaic.version = 11 : i64} {
  func.func @_bert_output_kernel(%arg0: i32, %arg1: memref<16x256xbf16, #tpu.memory_space<vmem>>, %arg2: memref<256x128xbf16, #tpu.memory_space<vmem>>, %arg3: memref<1x128xf32, #tpu.memory_space<vmem>>, %arg4: memref<16x128xf32, #tpu.memory_space<vmem>>, %arg5: memref<1x128xf32, #tpu.memory_space<vmem>>, %arg6: memref<1x128xf32, #tpu.memory_space<vmem>>, %arg7: memref<16x128xf32, #tpu.memory_space<vmem>>) attributes {dimension_semantics = [#tpu.dimension_semantics<parallel>], iteration_bounds = array<i64: 1>, scalar_prefetch = 0 : i64, scratch_operands = 0 : i64, tpu.core_type = #tpu.core_type<tc>, window_params = [{transform_indices = @transform_0, window_bounds = array<i64: 16, 256>}, {pipeline_mode = #tpu.pipeline_mode<synchronous>, transform_indices = @transform_1, window_bounds = array<i64: 256, 128>}, {pipeline_mode = #tpu.pipeline_mode<synchronous>, transform_indices = @transform_2, window_bounds = array<i64: 1, 128>}, {transform_indices = @transform_3, window_bounds = array<i64: 16, 128>}, {pipeline_mode = #tpu.pipeline_mode<synchronous>, transform_indices = @transform_4, window_bounds = array<i64: 1, 128>}, {pipeline_mode = #tpu.pipeline_mode<synchronous>, transform_indices = @transform_5, window_bounds = array<i64: 1, 128>}, {transform_indices = @transform_6, window_bounds = array<i64: 16, 128>}]} {
    %c0 = arith.constant 0 : index
    %c0_0 = arith.constant 0 : index
    %0 = vector.load %arg1[%c0, %c0_0] : memref<16x256xbf16, #tpu.memory_space<vmem>>, vector<16x256xbf16>
    %c0_1 = arith.constant 0 : index
    %c0_2 = arith.constant 0 : index
    %1 = vector.load %arg2[%c0_1, %c0_2] : memref<256x128xbf16, #tpu.memory_space<vmem>>, vector<256x128xbf16>
    %cst = arith.constant dense<0.000000e+00> : vector<16x128xf32>
    %2 = tpu.matmul %0, %1, %cst {dimension_numbers = #tpu.dot_dimension_numbers<[1], [0], [0], [1], [0, 0, 1, 1], [], []>} : vector<16x256xbf16>, vector<256x128xbf16>, vector<16x128xf32> -> vector<16x128xf32>
    %c0_3 = arith.constant 0 : index
    %c0_4 = arith.constant 0 : index
    %3 = vector.load %arg3[%c0_3, %c0_4] : memref<1x128xf32, #tpu.memory_space<vmem>>, vector<1x128xf32>
    %4 = vector.broadcast %3 : vector<1x128xf32> to vector<16x128xf32>
    %5 = arith.addf %2, %4 : vector<16x128xf32>
    %c0_5 = arith.constant 0 : index
    %c0_6 = arith.constant 0 : index
    %6 = vector.load %arg4[%c0_5, %c0_6] : memref<16x128xf32, #tpu.memory_space<vmem>>, vector<16x128xf32>
    %7 = arith.addf %5, %6 : vector<16x128xf32>
    %cst_7 = arith.constant dense<0.000000e+00> : vector<16xf32>
    %8 = vector.multi_reduction <add>, %7, %cst_7 [1] : vector<16x128xf32> to vector<16xf32>
    %9 = vector.shape_cast %8 : vector<16xf32> to vector<16x1xf32>
    %cst_8 = arith.constant 1.280000e+02 : f32
    %10 = vector.broadcast %cst_8 : f32 to vector<16x1xf32>
    %11 = arith.divf %9, %10 : vector<16x1xf32>
    %12 = arith.mulf %7, %7 : vector<16x128xf32>
    %cst_9 = arith.constant dense<0.000000e+00> : vector<16xf32>
    %13 = vector.multi_reduction <add>, %12, %cst_9 [1] : vector<16x128xf32> to vector<16xf32>
    %14 = vector.shape_cast %13 : vector<16xf32> to vector<16x1xf32>
    %cst_10 = arith.constant 1.280000e+02 : f32
    %15 = vector.broadcast %cst_10 : f32 to vector<16x1xf32>
    %16 = arith.divf %14, %15 : vector<16x1xf32>
    %17 = arith.mulf %11, %11 : vector<16x1xf32>
    %18 = arith.subf %16, %17 : vector<16x1xf32>
    %cst_11 = arith.constant 0.000000e+00 : f32
    %19 = vector.broadcast %cst_11 : f32 to vector<16x1xf32>
    %20 = arith.maximumf %18, %19 : vector<16x1xf32>
    %cst_12 = arith.constant 9.99999996E-13 : f32
    %21 = vector.broadcast %cst_12 : f32 to vector<16x1xf32>
    %22 = arith.addf %20, %21 : vector<16x1xf32>
    %23 = math.rsqrt %22 : vector<16x1xf32>
    %24 = vector.broadcast %11 : vector<16x1xf32> to vector<16x128xf32>
    %25 = arith.subf %7, %24 : vector<16x128xf32>
    %26 = vector.broadcast %23 : vector<16x1xf32> to vector<16x128xf32>
    %27 = arith.mulf %25, %26 : vector<16x128xf32>
    %c0_13 = arith.constant 0 : index
    %c0_14 = arith.constant 0 : index
    %28 = vector.load %arg5[%c0_13, %c0_14] : memref<1x128xf32, #tpu.memory_space<vmem>>, vector<1x128xf32>
    %29 = vector.broadcast %28 : vector<1x128xf32> to vector<16x128xf32>
    %30 = arith.mulf %27, %29 : vector<16x128xf32>
    %c0_15 = arith.constant 0 : index
    %c0_16 = arith.constant 0 : index
    %31 = vector.load %arg6[%c0_15, %c0_16] : memref<1x128xf32, #tpu.memory_space<vmem>>, vector<1x128xf32>
    %32 = vector.broadcast %31 : vector<1x128xf32> to vector<16x128xf32>
    %33 = arith.addf %30, %32 : vector<16x128xf32>
    %c0_17 = arith.constant 0 : index
    %c0_18 = arith.constant 0 : index
    %34 = vector.load %arg7[%c0_17, %c0_18] : memref<16x128xf32, #tpu.memory_space<vmem>>, vector<16x128xf32>
    tpu.vector_store %arg7[%c0_17, %c0_18], %33 {strides = array<i32>} : memref<16x128xf32, #tpu.memory_space<vmem>>, vector<16x128xf32>,
    return
  }
  func.func @transform_0(%arg0: i32) -> (i32, i32) {
    %c0_i32 = arith.constant 0 : i32
    %c0_i32_0 = arith.constant 0 : i32
    return %arg0, %c0_i32 : i32, i32
  }
  func.func @transform_1(%arg0: i32) -> (i32, i32) {
    %c0_i32 = arith.constant 0 : i32
    %c0_i32_0 = arith.constant 0 : i32
    %c0_i32_1 = arith.constant 0 : i32
    return %c0_i32, %c0_i32_0 : i32, i32
  }
  func.func @transform_2(%arg0: i32) -> (i32, i32) {
    %c0_i32 = arith.constant 0 : i32
    %c0_i32_0 = arith.constant 0 : i32
    %c0_i32_1 = arith.constant 0 : i32
    return %c0_i32, %c0_i32_0 : i32, i32
  }
  func.func @transform_3(%arg0: i32) -> (i32, i32) {
    %c0_i32 = arith.constant 0 : i32
    %c0_i32_0 = arith.constant 0 : i32
    return %arg0, %c0_i32 : i32, i32
  }
  func.func @transform_4(%arg0: i32) -> (i32, i32) {
    %c0_i32 = arith.constant 0 : i32
    %c0_i32_0 = arith.constant 0 : i32
    %c0_i32_1 = arith.constant 0 : i32
    return %c0_i32, %c0_i32_0 : i32, i32
  }
  func.func @transform_5(%arg0: i32) -> (i32, i32) {
    %c0_i32 = arith.constant 0 : i32
    %c0_i32_0 = arith.constant 0 : i32
    %c0_i32_1 = arith.constant 0 : i32
    return %c0_i32, %c0_i32_0 : i32, i32
  }
  func.func @transform_6(%arg0: i32) -> (i32, i32) {
    %c0_i32 = arith.constant 0 : i32
    %c0_i32_0 = arith.constant 0 : i32
    return %arg0, %c0_i32 : i32, i32
  }
}

</mosaic_0001>

<llo_original>
// kernel: tpu_custom_call.1
$region0: #{tpu_custom_call.1}
  #allocation0 [shape = 'u32[]', space=smem, size = 0x4, offset = 0x4, fixed_abs, tag = 'smem constant byte address 0x4 - core index']
  #allocation1 [shape = 'u32[72,128]{1,0:T(1,128)}', space=vmem, size = 0x9000, scoped, tag = 'internal scratch']
  %s0 = inlined_call_operand.hbm [shape: bf16[16,256], index: 0, kind: input, shape index: {}]
  %s1 = inlined_call_operand.hbm [shape: bf16[256,128], index: 1, kind: input, shape index: {}]
  %s2 = inlined_call_operand.vmem [shape: f32[1,128], index: 2, kind: input, shape index: {}]
  %s3 = inlined_call_operand.hbm [shape: f32[16,128], index: 3, kind: input, shape index: {}]
  %s4 = inlined_call_operand.vmem [shape: f32[1,128], index: 4, kind: input, shape index: {}]
  %s5 = inlined_call_operand.vmem [shape: f32[1,128], index: 5, kind: input, shape index: {}]
  %s6 = inlined_call_operand.hbm [shape: f32[16,128], index: 6, kind: output, shape index: {}]
  %s7 = sld [smem:[#allocation0]]
  $region46: #{tpu_custom_call.1} parent=0
    _
  %s9 = ssub.s32 1, %s7
  %s10 = scalar_select 0, %s9, %s7
  $region1: #{tpu_custom_call.1} parent=0
    #allocation2 [shape = 'u8[8192]{0}', space=vmem, size = 0x2000, scoped, tag = 'input window, operand 0, single buffered']
    #allocation3 [shape = 's32[1]{0}', space=sflag, size = 0x4, scoped, tag = 'scoped memory for tpu_custom_call.1']
    #allocation4 [shape = 's32[1]{0}', space=sflag, size = 0x4, scoped, tag = 'scoped memory for tpu_custom_call.1']
    #allocation5 [shape = 'u8[65536]{0}', space=vmem, size = 0x10000, scoped, tag = 'input window, operand 1, single buffered']
    #allocation6 [shape = 's32[1]{0}', space=sflag, size = 0x4, scoped, tag = 'scoped memory for tpu_custom_call.1']
    #allocation7 [shape = 'u8[8192]{0}', space=vmem, size = 0x2000, scoped, tag = 'input window, operand 3, single buffered']
    #allocation8 [shape = 'u8[8192]{0}', space=vmem, size = 0x2000, scoped, tag = 'output window, operand 0, single buffered']
    %11 = vsyncpa [#allocation3], 0
    %12 = vsyncpa [#allocation6], 0
    %13 = vsyncpa [#allocation4], 0
    // Predicated region
    $region2: #{tpu_custom_call.1} parent=1 // pred_check
      _
    $region3: #{tpu_custom_call.1} parent=1 // pred_check_branch
      %15 = sbr.rel (0) target = $region5
    $region4: #{tpu_custom_call.1} parent=1 // pred_region
      %17 = vsyncadd [#allocation3], 0
      %s18 = sshll.u32 %s0, 4
      %s19 = int_to_ptr.hbm [resolvable:$true] %s18
      %s20 = sshll.u32 [#allocation2], 4
      %s21 = int_to_ptr.vmem [resolvable:$true] %s20
      %26 = dma.hbm_to_vmem [thread:$0]  %s19, 256, %s21, [#allocation3], 128, 128, 8
    $region5: #{tpu_custom_call.1} parent=1 // pred_fallthru
      _
    // Predicated region
    $region6: #{tpu_custom_call.1} parent=1 // pred_check
      _
    $region7: #{tpu_custom_call.1} parent=1 // pred_check_branch
      %28 = sbr.rel (0) target = $region9
    $region8: #{tpu_custom_call.1} parent=1 // pred_region
      %30 = vsyncadd [#allocation6], 0
      %s31 = sshll.u32 %s1, 4
      %s32 = int_to_ptr.hbm [resolvable:$true] %s31
      %s33 = sshll.u32 [#allocation5], 4
      %s34 = int_to_ptr.vmem [resolvable:$true] %s33
      %39 = dma.hbm_to_vmem [thread:$0]  %s32, 2048, %s34, [#allocation6], 64, 64, 4
    $region9: #{tpu_custom_call.1} parent=1 // pred_fallthru
      _
    // Predicated region
    $region10: #{tpu_custom_call.1} parent=1 // pred_check
      _
    $region11: #{tpu_custom_call.1} parent=1 // pred_check_branch
      %41 = sbr.rel (0) target = $region13
    $region12: #{tpu_custom_call.1} parent=1 // pred_region
      _
    $region13: #{tpu_custom_call.1} parent=1 // pred_fallthru
      _
    // Predicated region
    $region14: #{tpu_custom_call.1} parent=1 // pred_check
      _
    $region15: #{tpu_custom_call.1} parent=1 // pred_check_branch
      %43 = sbr.rel (0) target = $region17
    $region16: #{tpu_custom_call.1} parent=1 // pred_region
      %45 = vsyncadd [#allocation6], 0
      %s46 = sshll.u32 %s3, 4
      %s47 = int_to_ptr.hbm [resolvable:$true] %s46
      %s48 = sshll.u32 [#allocation7], 4
      %s49 = int_to_ptr.vmem [resolvable:$true] %s48
      %54 = dma.hbm_to_vmem [thread:$0]  %s47, 256, %s49, [#allocation6], 128, 128, 8
    $region17: #{tpu_custom_call.1} parent=1 // pred_fallthru
      _
    // Predicated region
    $region18: #{tpu_custom_call.1} parent=1 // pred_check
      _
    $region19: #{tpu_custom_call.1} parent=1 // pred_check_branch
      %56 = sbr.rel (0) target = $region21
    $region20: #{tpu_custom_call.1} parent=1 // pred_region
      _
    $region21: #{tpu_custom_call.1} parent=1 // pred_fallthru
      _
    // Predicated region
    $region22: #{tpu_custom_call.1} parent=1 // pred_check
      _
    $region23: #{tpu_custom_call.1} parent=1 // pred_check_branch
      %58 = sbr.rel (0) target = $region25
    $region24: #{tpu_custom_call.1} parent=1 // pred_region
      _
    $region25: #{tpu_custom_call.1} parent=1 // pred_fallthru
      _
    // Predicated region
    $region26: #{tpu_custom_call.1} parent=1 // pred_check
      _
    $region27: #{tpu_custom_call.1} parent=1 // pred_check_branch
      %60 = sbr.rel (0) target = $region29
    $region28: #{tpu_custom_call.1} parent=1 // pred_region
      %62 = dma.done [#allocation3], 256
    $region29: #{tpu_custom_call.1} parent=1 // pred_fallthru
      _
    // Predicated region
    $region30: #{tpu_custom_call.1} parent=1 // pred_check
      _
    $region31: #{tpu_custom_call.1} parent=1 // pred_check_branch
      %64 = sbr.rel (0) target = $region33
    $region32: #{tpu_custom_call.1} parent=1 // pred_region
      %66 = dma.done [#allocation6], 2048
    $region33: #{tpu_custom_call.1} parent=1 // pred_fallthru
      _
    // Predicated region
    $region34: #{tpu_custom_call.1} parent=1 // pred_check
      _
    $region35: #{tpu_custom_call.1} parent=1 // pred_check_branch
      %68 = sbr.rel (0) target = $region37
    $region36: #{tpu_custom_call.1} parent=1 // pred_region
      %70 = dma.done [#allocation6], 256
    $region37: #{tpu_custom_call.1} parent=1 // pred_fallthru
      _
    %v71 = vld [vmem:[#allocation2] sm:$0xff]
    %v72 = vld [vmem:[#allocation2 + $0x8] sm:$0xff]
    %v73 = vld [vmem:[#allocation5] sm:$0xf]
    %v74 = vld [vmem:[#allocation5 + $0x4] sm:$0xf]
    %v75 = vld [vmem:[#allocation5 + $0x8] sm:$0xf]
    %v76 = vld [vmem:[#allocation5 + $0xc] sm:$0xf]
    %v77 = vld [vmem:[#allocation5 + $0x10] sm:$0xf]
    %v78 = vld [vmem:[#allocation5 + $0x14] sm:$0xf]
    %v79 = vld [vmem:[#allocation5 + $0x18] sm:$0xf]
    %v80 = vld [vmem:[#allocation5 + $0x1c] sm:$0xf]
    %v81 = vld [vmem:[#allocation5 + $0x20] sm:$0xf]
    %v82 = vld [vmem:[#allocation5 + $0x24] sm:$0xf]
    %v83 = vld [vmem:[#allocation5 + $0x28] sm:$0xf]
    %v84 = vld [vmem:[#allocation5 + $0x2c] sm:$0xf]
    %v85 = vld [vmem:[#allocation5 + $0x30] sm:$0xf]
    %v86 = vld [vmem:[#allocation5 + $0x34] sm:$0xf]
    %v87 = vld [vmem:[#allocation5 + $0x38] sm:$0xf]
    %v88 = vld [vmem:[#allocation5 + $0x3c] sm:$0xf]
    %v89 = vld [vmem:[#allocation5 + $0x40] sm:$0xf]
    %v90 = vld [vmem:[#allocation5 + $0x44] sm:$0xf]
    %v91 = vld [vmem:[#allocation5 + $0x48] sm:$0xf]
    %v92 = vld [vmem:[#allocation5 + $0x4c] sm:$0xf]
    %v93 = vld [vmem:[#allocation5 + $0x50] sm:$0xf]
    %v94 = vld [vmem:[#allocation5 + $0x54] sm:$0xf]
    %v95 = vld [vmem:[#allocation5 + $0x58] sm:$0xf]
    %v96 = vld [vmem:[#allocation5 + $0x5c] sm:$0xf]
    %v97 = vld [vmem:[#allocation5 + $0x60] sm:$0xf]
    %v98 = vld [vmem:[#allocation5 + $0x64] sm:$0xf]
    %v99 = vld [vmem:[#allocation5 + $0x68] sm:$0xf]
    %v100 = vld [vmem:[#allocation5 + $0x6c] sm:$0xf]
    %v101 = vld [vmem:[#allocation5 + $0x70] sm:$0xf]
    %v102 = vld [vmem:[#allocation5 + $0x74] sm:$0xf]
    %v103 = vld [vmem:[#allocation5 + $0x78] sm:$0xf]
    %v104 = vld [vmem:[#allocation5 + $0x7c] sm:$0xf]
    %v105 = vld [vmem:[%s2] sm:$0x1]
    %v107 = vperm.slane %v105, 0
    %v111 = vunpack.c.l.b16 %v71
    %v112 = vunpack.c.h.b16 %v71
    %v113 = vunpack.c.l.b16 %v72
    %v114 = vunpack.c.h.b16 %v72
    %v115 = vpack.c.b16 %v113, %v111
    %v116 = vpack.c.b16 %v114, %v112
    %v151 = vunpack.c.l.b16 %v73
    %v152 = vunpack.c.l.b16 %v74
    %v153 = vunpack.c.l.b16 %v75
    %v154 = vunpack.c.l.b16 %v76
    %v155 = vunpack.c.l.b16 %v77
    %v156 = vunpack.c.l.b16 %v78
    %v157 = vunpack.c.l.b16 %v79
    %v158 = vunpack.c.l.b16 %v80
    %v159 = vunpack.c.l.b16 %v81
    %v160 = vunpack.c.l.b16 %v82
    %v161 = vunpack.c.l.b16 %v83
    %v162 = vunpack.c.l.b16 %v84
    %v163 = vunpack.c.l.b16 %v85
    %v164 = vunpack.c.l.b16 %v86
    %v165 = vunpack.c.l.b16 %v87
    %v166 = vunpack.c.l.b16 %v88
    %v167 = vunpack.c.l.b16 %v89
    %v168 = vunpack.c.l.b16 %v90
    %v169 = vunpack.c.l.b16 %v91
    %v170 = vunpack.c.l.b16 %v92
    %v171 = vunpack.c.l.b16 %v93
    %v172 = vunpack.c.l.b16 %v94
    %v173 = vunpack.c.l.b16 %v95
    %v174 = vunpack.c.l.b16 %v96
    %v175 = vunpack.c.l.b16 %v97
    %v176 = vunpack.c.l.b16 %v98
    %v177 = vunpack.c.l.b16 %v99
    %v178 = vunpack.c.l.b16 %v100
    %v179 = vunpack.c.l.b16 %v101
    %v180 = vunpack.c.l.b16 %v102
    %v181 = vunpack.c.l.b16 %v103
    %v182 = vunpack.c.l.b16 %v104
    %v183 = vpack.c.b16 %v152, %v151
    %v184 = vpack.c.b16 %v154, %v153
    %v185 = vpack.c.b16 %v156, %v155
    %v186 = vpack.c.b16 %v158, %v157
    %v187 = vpack.c.b16 %v160, %v159
    %v188 = vpack.c.b16 %v162, %v161
    %v189 = vpack.c.b16 %v164, %v163
    %v190 = vpack.c.b16 %v166, %v165
    %v191 = vpack.c.b16 %v168, %v167
    %v192 = vpack.c.b16 %v170, %v169
    %v193 = vpack.c.b16 %v172, %v171
    %v194 = vpack.c.b16 %v174, %v173
    %v195 = vpack.c.b16 %v176, %v175
    %v196 = vpack.c.b16 %v178, %v177
    %v197 = vpack.c.b16 %v180, %v179
    %v198 = vpack.c.b16 %v182, %v181
    %215 = vmatpush.bf16.msra.mxu0 %v190
    %216 = vmatpush.bf16.msra.mxu0 %v189
    %217 = vmatpush.bf16.msra.mxu0 %v188
    %218 = vmatpush.bf16.msra.mxu0 %v187
    %219 = vmatpush.bf16.msra.mxu0 %v186
    %220 = vmatpush.bf16.msra.mxu0 %v185
    %221 = vmatpush.bf16.msra.mxu0 %v184
    %222 = vmatpush.bf16.msra.mxu0 %v183
    %223 = vmatmul.bf16.gmra.mxu0 %v115
    %v224 = vpop.f32.mrf.mxu0
    %v225 = vadd.f32 %v107, %v224
    %v226 = vpop.f32.mrf.mxu0
    %v227 = vadd.f32 %v107, %v226
    %228 = vdwg.mxu0
    %229 = vmatpush.bf16.msra.mxu0 %v198
    %230 = vmatpush.bf16.msra.mxu0 %v197
    %231 = vmatpush.bf16.msra.mxu0 %v196
    %232 = vmatpush.bf16.msra.mxu0 %v195
    %233 = vmatpush.bf16.msra.mxu0 %v194
    %234 = vmatpush.bf16.msra.mxu0 %v193
    %235 = vmatpush.bf16.msra.mxu0 %v192
    %236 = vmatpush.bf16.msra.mxu0 %v191
    %237 = vmatmul.bf16.gmra.mxu0 %v116
    %v238 = vpop.f32.mrf.mxu0
    %v239 = vadd.f32 %v225, %v238
    %v240 = vpop.f32.mrf.mxu0
    %v241 = vadd.f32 %v227, %v240
    %242 = vdwg.mxu0
    %v243 = vld [vmem:[#allocation7] sm:$0xff]
    %v244 = vld [vmem:[#allocation7 + $0x8] sm:$0xff]
    %v245 = vadd.f32 %v239, %v243
    %v246 = vadd.f32 %v241, %v244
    %247 = vadd.xlane.f32.xlu0 %v245
    %v248 = vpop.xlane.xlu0 %247
    %249 = vadd.xlane.f32.xlu0 %v246
    %v250 = vpop.xlane.xlu0 %249
    %v251 = vrcp.pop 128.0
    %v252 = vmul.f32 128.0, %v251
    %v253 = vsub.f32 1.0, %v252
    %v254 = vmul.f32 %v251, %v253
    %v255 = vadd.f32 %v251, %v254
    %vm256 = vweird.f32 %v251
    %v257 = vsel %vm256, %v251, %v255
    %v258 = vmul.f32 %v248, %v257
    %v259 = vmul.f32 %v250, %v257
    %v260 = vmul.f32 %v245, %v245
    %v261 = vmul.f32 %v246, %v246
    %262 = vadd.xlane.f32.xlu0 %v260
    %v263 = vpop.xlane.xlu0 %262
    %264 = vadd.xlane.f32.xlu0 %v261
    %v265 = vpop.xlane.xlu0 %264
    %v266 = vmul.f32 %v263, %v257
    %v267 = vmul.f32 %v265, %v257
    %v268 = vmul.f32 %v258, %v258
    %v269 = vmul.f32 %v259, %v259
    %v270 = vsub.f32 %v266, %v268
    %v271 = vsub.f32 %v267, %v269
    %v272 = vmax.f32 %v270, 0.0
    %v273 = vmax.f32 %v271, 0.0
    %v274 = vadd.f32 %v272, 1e-12
    %v275 = vadd.f32 %v273, 1e-12
    %v276 = vrsqrt.pop %v274
    %v277 = vmul.f32 %v276, %v274
    %v278 = vmul.f32 %v277, %v276
    %v279 = vmul.f32 0.5, %v278
    %v280 = vsub.f32 1.5, %v279
    %v281 = vmul.f32 %v276, %v280
    %vm282 = vweird.f32 %v274
    %vm283 = vweird.f32 %v276
    %vm284 = vmor %vm282, %vm283
    %v285 = vsel %vm284, %v276, %v281
    %v286 = vrsqrt.pop %v275
    %v287 = vmul.f32 %v286, %v275
    %v288 = vmul.f32 %v287, %v286
    %v289 = vmul.f32 0.5, %v288
    %v290 = vsub.f32 1.5, %v289
    %v291 = vmul.f32 %v286, %v290
    %vm292 = vweird.f32 %v275
    %vm293 = vweird.f32 %v286
    %vm294 = vmor %vm292, %vm293
    %v295 = vsel %vm294, %v286, %v291
    %v296 = vsub.f32 %v245, %v258
    %v297 = vsub.f32 %v246, %v259
    %v298 = vmul.f32 %v296, %v285
    %v299 = vmul.f32 %v297, %v295
    %v300 = vld [vmem:[%s4] sm:$0x1]
    %v302 = vperm.slane %v300, 0
    %v304 = vmul.f32 %v298, %v302
    %v305 = vmul.f32 %v299, %v302
    %v306 = vld [vmem:[%s5] sm:$0x1]
    %v308 = vperm.slane %v306, 0
    %v310 = vadd.f32 %v304, %v308
    %v311 = vadd.f32 %v305, %v308
    %312 = vst [vmem:[#allocation8] sm:$0xff] %v310
    %313 = vst [vmem:[#allocation8 + $0x8] sm:$0xff] %v311
    // Predicated region
    $region38: #{tpu_custom_call.1} parent=1 // pred_check
      _
    $region39: #{tpu_custom_call.1} parent=1 // pred_check_branch
      %315 = sbr.rel (0) target = $region41
    $region40: #{tpu_custom_call.1} parent=1 // pred_region
      %317 = vsyncadd [#allocation4], 0
      %s318 = sshll.u32 [#allocation8], 4
      %s319 = int_to_ptr.vmem [resolvable:$true] %s318
      %s320 = sshll.u32 %s6, 4
      %s321 = int_to_ptr.hbm [resolvable:$true] %s320
      %326 = dma.vmem_to_hbm [thread:$0]  %s319, 256, %s321, [#allocation4], 128, 128, 8
    $region41: #{tpu_custom_call.1} parent=1 // pred_fallthru
      _
    // Predicated region
    $region42: #{tpu_custom_call.1} parent=1 // pred_check
      _
    $region43: #{tpu_custom_call.1} parent=1 // pred_check_branch
      %328 = sbr.rel (0) target = $region45
    $region44: #{tpu_custom_call.1} parent=1 // pred_region
      %330 = dma.done [#allocation4], 256
    $region45: #{tpu_custom_call.1} parent=1 // pred_fallthru
      _
    %331 = vsyncpa [#allocation3], 1
    %332 = vsyncpa [#allocation6], 1
    %333 = vsyncpa [#allocation4], 1

</llo_original>
